<compile_context>
chip_gen: v6e
topology: v6e:2x2x1
jax: 0.10.0
libtpu: 0.0.40
codegen_flags: <defaults>
</compile_context>

<pallas_src>
import functools
import numpy as np
import jax
import jax.numpy as jnp
from jax.experimental import pallas as pl
from jax.experimental.pallas import tpu as pltpu


def _round_up(x: int, m: int) -> int:
    return ((x + m - 1) // m) * m


def _loss_kernel(n_elems, n_stations,
                 pred_ref, targ_ref, w_ref, amps_ref, alpha_ref,
                 out_ref, acc_ref):
    i = pl.program_id(0)
    j = pl.program_id(1)

    # ---- init running SSE accumulator on the very first grid step ----
    @pl.when(jnp.logical_and(i == 0, j == 0))
    def _():
        acc_ref[...] = jnp.zeros_like(acc_ref)

    # ---- streamed MSE partial for this (s_tile, t_tile) block ----
    # (zero-padded regions contribute exactly 0 to the sum)
    d = pred_ref[...] - targ_ref[...]
    acc_ref[...] += jnp.sum(d * d, keepdims=True)            # (1,1) f32

    # ---- finalize on the very last grid step ----
    @pl.when(jnp.logical_and(i == pl.num_programs(0) - 1,
                             j == pl.num_programs(1) - 1))
    def _():
        # primary: MSE over the *logical* (unpadded) element count
        primary = acc_ref[...] / n_elems                      # (1,1)

        amps = amps_ref[...]                                  # (S, 8)
        seasonal = amps[:, 0:3]                               # (S, 3)

        # spatial consistency: weighted neighbor mean via one MXU matmul
        wmean = jnp.dot(w_ref[...], seasonal,
                        preferred_element_type=jnp.float32)   # (S, 3)
        dsp = seasonal - wmean
        spatial = jnp.sum(dsp * dsp, keepdims=True) / (n_stations * 3.0)

        # physics regularization
        annual = amps[:, 2:3]                                 # (S, 1)
        max_other = jnp.maximum(amps[:, 0:1], amps[:, 1:2])   # (S, 1)
        annual_pen = (jnp.sum(jnp.maximum(max_other - 0.8 * annual, 0.0),
                              keepdims=True) / n_stations)
        total_resid = amps[:, 3:4] + amps[:, 4:5]             # (S, 1)
        resid_pen = (jnp.sum(jnp.maximum(total_resid - 15.0, 0.0),
                             keepdims=True) / n_stations)
        physics = annual_pen + resid_pen                      # (1,1)

        a_sp = alpha_ref[0:1, 0:1]                            # (1,1)
        a_ph = alpha_ref[0:1, 1:2]                            # (1,1)
        total = primary + a_sp * spatial + a_ph * physics     # (1,1)

        # pack the 4 scalars into the single (1,4) output block
        col = jax.lax.broadcasted_iota(jnp.int32, (1, 4), 1)
        out_ref[...] = jnp.where(col == 0, total,
                        jnp.where(col == 1, primary,
                         jnp.where(col == 2, spatial, physics)))


@jax.jit
def _emd_loss_jit(predicted, target, w_dense, seasonal_amps, residual_amps, alphas):
    S, T = predicted.shape

    # tile sizes: lane dim multiple of 128 (<=1024), sublane dim multiple of 8 (<=256)
    s_tile = min(256, _round_up(S, 8))
    t_tile = min(1024, _round_up(T, 128))
    S_pad = _round_up(S, s_tile)
    T_pad = _round_up(T, t_tile)

    if (S_pad, T_pad) != (S, T):
        # zero-pad to tile multiples (zeros contribute nothing to the SSE).
        # At production shapes, pre-align S/T so this branch is a no-op.
        pad = ((0, S_pad - S), (0, T_pad - T))
        pred_p = jnp.pad(predicted, pad)
        targ_p = jnp.pad(target, pad)
    else:
        pred_p, targ_p = predicted, target

    # merge the two small parameter arrays into one lane-friendly (S, 8) input
    amps_packed = jnp.concatenate(
        [seasonal_amps.astype(jnp.float32),
         residual_amps.astype(jnp.float32),
         jnp.zeros((S, 3), jnp.float32)], axis=1)             # (S, 8)
    alphas2d = alphas.reshape(1, 2).astype(jnp.float32)

    kernel = functools.partial(_loss_kernel, float(S * T), float(S))
    grid = (S_pad // s_tile, T_pad // t_tile)

    out = pl.pallas_call(
        kernel,
        out_shape=jax.ShapeDtypeStruct((1, 4), jnp.float32),
        grid=grid,
        in_specs=[
            pl.BlockSpec((s_tile, t_tile), lambda i, j: (i, j)),   # predicted
            pl.BlockSpec((s_tile, t_tile), lambda i, j: (i, j)),   # target
            pl.BlockSpec((S, S), lambda i, j: (0, 0)),             # dense kNN weights (resident)
            pl.BlockSpec((S, 8), lambda i, j: (0, 0)),             # packed amplitudes (resident)
            pl.BlockSpec((1, 2), lambda i, j: (0, 0)),             # alphas (resident)
        ],
        out_specs=pl.BlockSpec((1, 4), lambda i, j: (0, 0)),
        scratch_shapes=[pltpu.VMEM((1, 1), jnp.float32)],          # running SSE accumulator
        compiler_params=pltpu.CompilerParams(
            dimension_semantics=("arbitrary", "arbitrary")),
    )(pred_p, targ_p, w_dense.astype(jnp.float32), amps_packed, alphas2d)

    total = out[0, 0]
    components = {"primary": out[0, 1], "spatial": out[0, 2], "physics": out[0, 3]}
    return total, components


def emd_denoised_loss(predicted, target, w_dense, seasonal_amps, residual_amps,
                      alpha_spatial=0.08, alpha_physics=0.03):
    """Mirrors ProductionEMDDenoisedLoss.forward -> (total_loss, loss_components).
    Returns device scalars (no host sync); caller decides when to block/convert."""
    alphas = jnp.asarray([alpha_spatial, alpha_physics], dtype=jnp.float32)
    return _emd_loss_jit(predicted, target, w_dense, seasonal_amps, residual_amps, alphas)


def build_neighbor_weight_matrix(coords: np.ndarray, n_neighbors: int) -> np.ndarray:
    """Deterministic stand-in for model._build_neighbor_graph (sklearn kd-tree not available),
    returned as a dense (S, S) weight matrix so the per-station gather + weighted sum is a matmul."""
    S = coords.shape[0]
    d = np.linalg.norm(coords[:, None, :] - coords[None, :, :], axis=-1)
    order = np.argsort(d, axis=1, kind="stable")
    idx = order[:, 1:n_neighbors + 1]                         # exclude self
    nd = np.take_along_axis(d, idx, axis=1)
    w = np.exp(-nd / np.mean(nd))
    w = w / (np.sum(w, axis=1, keepdims=True) + 1e-6)
    W = np.zeros((S, S), dtype=np.float32)
    rows = np.repeat(np.arange(S)[:, None], n_neighbors, axis=1)
    np.add.at(W, (rows, idx), w.astype(np.float32))
    return W


def _reference_loss(predicted, target, W, samp, ramp,
                    alpha_spatial=0.08, alpha_physics=0.03):
    primary = np.mean((predicted - target) ** 2)
    wmean = W @ samp
    spatial = np.sum((samp - wmean) ** 2) / (samp.shape[0] * 3)
    annual = samp[:, 2]
    max_other = np.maximum(samp[:, 0], samp[:, 1])
    annual_pen = np.mean(np.maximum(max_other - annual * 0.8, 0.0))
    resid_pen = np.mean(np.maximum(np.sum(ramp, axis=1) - 15.0, 0.0))
    physics = annual_pen + resid_pen
    total = primary + alpha_spatial * spatial + alpha_physics * physics
    return total, {"primary": primary, "spatial": spatial, "physics": physics}


if __name__ == "__main__":
    n_stations, n_timepoints, n_neighbors = 16, 32, 8

    key = jax.random.PRNGKey(0)
    k1, k2, k3, k4, k5 = jax.random.split(key, 5)

    # deterministic "model" state (shapes per module __init__)
    coords = np.asarray(jax.random.uniform(k1, (n_stations, 2)) * 100.0, dtype=np.float64)
    W = jnp.asarray(build_neighbor_weight_matrix(coords, n_neighbors))
    seasonal_amps = (8.0 + 0.5 * jax.random.normal(k2, (n_stations, 3))).astype(jnp.float32)
    residual_amps = (1.5 + 0.1 * jax.random.normal(k3, (n_stations, 2))).astype(jnp.float32)

    predicted = jax.random.normal(k4, (n_stations, n_timepoints), dtype=jnp.float32)
    target = jax.random.normal(k5, (n_stations, n_timepoints), dtype=jnp.float32)

    total, comps = emd_denoised_loss(predicted, target, W, seasonal_amps, residual_amps)
    total = jax.block_until_ready(total)

    ref_total, ref_comps = _reference_loss(np.asarray(predicted), np.asarray(target),
                                           np.asarray(W), np.asarray(seasonal_amps),
                                           np.asarray(residual_amps))
    np.testing.assert_allclose(float(total), ref_total, rtol=1e-3, atol=1e-5)
    for name in ("primary", "spatial", "physics"):
        np.testing.assert_allclose(float(comps[name]), ref_comps[name], rtol=1e-3, atol=1e-5)

    print("KERNEL_OK")
</pallas_src>

<mosaic_0001>
module attributes {stable_mosaic.version = 11 : i64} {
  func.func @_loss_kernel(%arg0: i32, %arg1: i32, %arg2: memref<16x128xf32, #tpu.memory_space<vmem>>, %arg3: memref<16x128xf32, #tpu.memory_space<vmem>>, %arg4: memref<16x16xf32, #tpu.memory_space<vmem>>, %arg5: memref<16x8xf32, #tpu.memory_space<vmem>>, %arg6: memref<1x2xf32, #tpu.memory_space<vmem>>, %arg7: memref<1x4xf32, #tpu.memory_space<vmem>>, %arg8: memref<1x1xf32, #tpu.memory_space<vmem>>) attributes {dimension_semantics = [#tpu.dimension_semantics<arbitrary>, #tpu.dimension_semantics<arbitrary>], iteration_bounds = array<i64: 1, 1>, scalar_prefetch = 0 : i64, scratch_operands = 1 : i64, tpu.core_type = #tpu.core_type<tc>, window_params = [{transform_indices = @transform_0, window_bounds = array<i64: 16, 128>}, {transform_indices = @transform_1, window_bounds = array<i64: 16, 128>}, {pipeline_mode = #tpu.pipeline_mode<synchronous>, transform_indices = @transform_2, window_bounds = array<i64: 16, 16>}, {pipeline_mode = #tpu.pipeline_mode<synchronous>, transform_indices = @transform_3, window_bounds = array<i64: 16, 8>}, {pipeline_mode = #tpu.pipeline_mode<synchronous>, transform_indices = @transform_4, window_bounds = array<i64: 1, 2>}, {pipeline_mode = #tpu.pipeline_mode<synchronous>, transform_indices = @transform_5, window_bounds = array<i64: 1, 4>}]} {
    %c0_i32 = arith.constant 0 : i32
    %0 = arith.cmpi eq, %arg0, %c0_i32 : i32
    %c0_i32_0 = arith.constant 0 : i32
    %1 = arith.cmpi eq, %arg1, %c0_i32_0 : i32
    %2 = arith.andi %0, %1 : i1
    %3 = arith.extui %2 : i1 to i32
    %c0_i32_1 = arith.constant 0 : i32
    %4 = arith.cmpi ne, %3, %c0_i32_1 : i32
    scf.if %4 {
      %cst_12 = arith.constant 0.000000e+00 : f32
      %22 = vector.broadcast %cst_12 : f32 to vector<1x1xf32>
      %c0_13 = arith.constant 0 : index
      %c0_14 = arith.constant 0 : index
      %23 = vector.load %arg8[%c0_13, %c0_14] : memref<1x1xf32, #tpu.memory_space<vmem>>, vector<1x1xf32>
      tpu.vector_store %arg8[%c0_13, %c0_14], %22 {strides = array<i32>} : memref<1x1xf32, #tpu.memory_space<vmem>>, vector<1x1xf32>,
    } else {
    }
    %c0 = arith.constant 0 : index
    %c0_2 = arith.constant 0 : index
    %5 = vector.load %arg2[%c0, %c0_2] : memref<16x128xf32, #tpu.memory_space<vmem>>, vector<16x128xf32>
    %c0_3 = arith.constant 0 : index
    %c0_4 = arith.constant 0 : index
    %6 = vector.load %arg3[%c0_3, %c0_4] : memref<16x128xf32, #tpu.memory_space<vmem>>, vector<16x128xf32>
    %7 = arith.subf %5, %6 : vector<16x128xf32>
    %c0_5 = arith.constant 0 : index
    %c0_6 = arith.constant 0 : index
    %8 = vector.load %arg8[%c0_5, %c0_6] : memref<1x1xf32, #tpu.memory_space<vmem>>, vector<1x1xf32>
    %9 = arith.mulf %7, %7 : vector<16x128xf32>
    %10 = vector.shape_cast %9 : vector<16x128xf32> to vector<1x16x128xf32>
    %cst = arith.constant dense<0.000000e+00> : vector<1xf32>
    %11 = vector.multi_reduction <add>, %10, %cst [1, 2] : vector<1x16x128xf32> to vector<1xf32>
    %12 = vector.shape_cast %11 : vector<1xf32> to vector<1x1x1xf32>
    %13 = vector.extract %12[0, 0, 0] : f32 from vector<1x1x1xf32>
    %14 = vector.broadcast %13 : f32 to vector<1x1xf32>
    %15 = arith.addf %8, %14 : vector<1x1xf32>
    %c0_7 = arith.constant 0 : index
    %c0_8 = arith.constant 0 : index
    %16 = vector.load %arg8[%c0_7, %c0_8] : memref<1x1xf32, #tpu.memory_space<vmem>>, vector<1x1xf32>
    tpu.vector_store %arg8[%c0_7, %c0_8], %15 {strides = array<i32>} : memref<1x1xf32, #tpu.memory_space<vmem>>, vector<1x1xf32>,
    %c0_i32_9 = arith.constant 0 : i32
    %17 = arith.cmpi eq, %arg0, %c0_i32_9 : i32
    %c0_i32_10 = arith.constant 0 : i32
    %18 = arith.cmpi eq, %arg1, %c0_i32_10 : i32
    %19 = arith.andi %17, %18 : i1
    %20 = arith.extui %19 : i1 to i32
    %c0_i32_11 = arith.constant 0 : i32
    %21 = arith.cmpi ne, %20, %c0_i32_11 : i32
    scf.if %21 {
      %c0_12 = arith.constant 0 : index
      %c0_13 = arith.constant 0 : index
      %22 = vector.load %arg8[%c0_12, %c0_13] : memref<1x1xf32, #tpu.memory_space<vmem>>, vector<1x1xf32>
      %cst_14 = arith.constant 5.120000e+02 : f32
      %23 = vector.broadcast %cst_14 : f32 to vector<1x1xf32>
      %24 = arith.divf %22, %23 : vector<1x1xf32>
      %c0_15 = arith.constant 0 : index
      %c0_16 = arith.constant 0 : index
      %25 = vector.load %arg5[%c0_15, %c0_16] : memref<16x8xf32, #tpu.memory_space<vmem>>, vector<16x8xf32>
      %26 = vector.extract_strided_slice %25 {offsets = [0, 0], sizes = [16, 3], strides = [1, 1]} : vector<16x8xf32> to vector<16x3xf32>
      %c0_17 = arith.constant 0 : index
      %c0_18 = arith.constant 0 : index
      %27 = vector.load %arg4[%c0_17, %c0_18] : memref<16x16xf32, #tpu.memory_space<vmem>>, vector<16x16xf32>
      %cst_19 = arith.constant dense<0.000000e+00> : vector<16x3xf32>
      %28 = tpu.matmul %27, %26, %cst_19 {dimension_numbers = #tpu.dot_dimension_numbers<[1], [0], [0], [1], [0, 0, 1, 1], [], []>} : vector<16x16xf32>, vector<16x3xf32>, vector<16x3xf32> -> vector<16x3xf32>
      %29 = arith.subf %26, %28 : vector<16x3xf32>
      %30 = arith.mulf %29, %29 : vector<16x3xf32>
      %31 = vector.shape_cast %30 : vector<16x3xf32> to vector<1x16x3xf32>
      %cst_20 = arith.constant dense<0.000000e+00> : vector<1xf32>
      %32 = vector.multi_reduction <add>, %31, %cst_20 [1, 2] : vector<1x16x3xf32> to vector<1xf32>
      %33 = vector.shape_cast %32 : vector<1xf32> to vector<1x1x1xf32>
      %34 = vector.extract %33[0, 0, 0] : f32 from vector<1x1x1xf32>
      %35 = vector.broadcast %34 : f32 to vector<1x1xf32>
      %cst_21 = arith.constant 4.800000e+01 : f32
      %36 = vector.broadcast %cst_21 : f32 to vector<1x1xf32>
      %37 = arith.divf %35, %36 : vector<1x1xf32>
      %38 = vector.extract_strided_slice %25 {offsets = [0, 2], sizes = [16, 1], strides = [1, 1]} : vector<16x8xf32> to vector<16x1xf32>
      %39 = vector.extract_strided_slice %25 {offsets = [0, 0], sizes = [16, 1], strides = [1, 1]} : vector<16x8xf32> to vector<16x1xf32>
      %40 = vector.extract_strided_slice %25 {offsets = [0, 1], sizes = [16, 1], strides = [1, 1]} : vector<16x8xf32> to vector<16x1xf32>
      %41 = arith.maximumf %39, %40 : vector<16x1xf32>
      %cst_22 = arith.constant 8.000000e-01 : f32
      %42 = vector.broadcast %cst_22 : f32 to vector<16x1xf32>
      %43 = arith.mulf %42, %38 : vector<16x1xf32>
      %44 = arith.subf %41, %43 : vector<16x1xf32>
      %cst_23 = arith.constant 0.000000e+00 : f32
      %45 = vector.broadcast %cst_23 : f32 to vector<16x1xf32>
      %46 = arith.maximumf %44, %45 : vector<16x1xf32>
      %47 = vector.shape_cast %46 : vector<16x1xf32> to vector<1x16x1xf32>
      %cst_24 = arith.constant dense<0.000000e+00> : vector<1xf32>
      %48 = vector.multi_reduction <add>, %47, %cst_24 [1, 2] : vector<1x16x1xf32> to vector<1xf32>
      %49 = vector.shape_cast %48 : vector<1xf32> to vector<1x1x1xf32>
      %50 = vector.extract %49[0, 0, 0] : f32 from vector<1x1x1xf32>
      %51 = vector.broadcast %50 : f32 to vector<1x1xf32>
      %cst_25 = arith.constant 1.600000e+01 : f32
      %52 = vector.broadcast %cst_25 : f32 to vector<1x1xf32>
      %53 = arith.divf %51, %52 : vector<1x1xf32>
      %54 = vector.extract_strided_slice %25 {offsets = [0, 3], sizes = [16, 1], strides = [1, 1]} : vector<16x8xf32> to vector<16x1xf32>
      %55 = vector.extract_strided_slice %25 {offsets = [0, 4], sizes = [16, 1], strides = [1, 1]} : vector<16x8xf32> to vector<16x1xf32>
      %56 = arith.addf %54, %55 : vector<16x1xf32>
      %cst_26 = arith.constant 1.500000e+01 : f32
      %57 = vector.broadcast %cst_26 : f32 to vector<16x1xf32>
      %58 = arith.subf %56, %57 : vector<16x1xf32>
      %cst_27 = arith.constant 0.000000e+00 : f32
      %59 = vector.broadcast %cst_27 : f32 to vector<16x1xf32>
      %60 = arith.maximumf %58, %59 : vector<16x1xf32>
      %61 = vector.shape_cast %60 : vector<16x1xf32> to vector<1x16x1xf32>
      %cst_28 = arith.constant dense<0.000000e+00> : vector<1xf32>
      %62 = vector.multi_reduction <add>, %61, %cst_28 [1, 2] : vector<1x16x1xf32> to vector<1xf32>
      %63 = vector.shape_cast %62 : vector<1xf32> to vector<1x1x1xf32>
      %64 = vector.extract %63[0, 0, 0] : f32 from vector<1x1x1xf32>
      %65 = vector.broadcast %64 : f32 to vector<1x1xf32>
      %cst_29 = arith.constant 1.600000e+01 : f32
      %66 = vector.broadcast %cst_29 : f32 to vector<1x1xf32>
      %67 = arith.divf %65, %66 : vector<1x1xf32>
      %68 = arith.addf %53, %67 : vector<1x1xf32>
      %c0_30 = arith.constant 0 : index
      %c0_31 = arith.constant 0 : index
      %69 = vector.load %arg6[%c0_30, %c0_31] : memref<1x2xf32, #tpu.memory_space<vmem>>, vector<1x1xf32>
      %c0_32 = arith.constant 0 : index
      %c1 = arith.constant 1 : index
      %70 = vector.load %arg6[%c0_32, %c1] : memref<1x2xf32, #tpu.memory_space<vmem>>, vector<1x1xf32>
      %71 = arith.mulf %69, %37 : vector<1x1xf32>
      %72 = arith.addf %24, %71 : vector<1x1xf32>
      %73 = arith.mulf %70, %68 : vector<1x1xf32>
      %74 = arith.addf %72, %73 : vector<1x1xf32>
      %75 = tpu.iota {dimensions = array<i32: 1>} : vector<1x4xi32>
      %c0_i32_33 = arith.constant 0 : i32
      %76 = vector.broadcast %c0_i32_33 : i32 to vector<1x4xi32>
      %77 = arith.cmpi eq, %75, %76 : vector<1x4xi32>
      %c1_i32 = arith.constant 1 : i32
      %78 = vector.broadcast %c1_i32 : i32 to vector<1x4xi32>
      %79 = arith.cmpi eq, %75, %78 : vector<1x4xi32>
      %c2_i32 = arith.constant 2 : i32
      %80 = vector.broadcast %c2_i32 : i32 to vector<1x4xi32>
      %81 = arith.cmpi eq, %75, %80 : vector<1x4xi32>
      %82 = vector.shape_cast %37 : vector<1x1xf32> to vector<1x1xf32>
      %83 = vector.broadcast %82 : vector<1x1xf32> to vector<1x4xf32>
      %84 = vector.shape_cast %68 : vector<1x1xf32> to vector<1x1xf32>
      %85 = vector.broadcast %84 : vector<1x1xf32> to vector<1x4xf32>
      %86 = arith.select %81, %83, %85 : vector<1x4xi1>, vector<1x4xf32>
      %87 = vector.shape_cast %24 : vector<1x1xf32> to vector<1x1xf32>
      %88 = vector.broadcast %87 : vector<1x1xf32> to vector<1x4xf32>
      %89 = arith.select %79, %88, %86 : vector<1x4xi1>, vector<1x4xf32>
      %90 = vector.shape_cast %74 : vector<1x1xf32> to vector<1x1xf32>
      %91 = vector.broadcast %90 : vector<1x1xf32> to vector<1x4xf32>
      %92 = arith.select %77, %91, %89 : vector<1x4xi1>, vector<1x4xf32>
      %c0_34 = arith.constant 0 : index
      %c0_35 = arith.constant 0 : index
      %93 = vector.load %arg7[%c0_34, %c0_35] : memref<1x4xf32, #tpu.memory_space<vmem>>, vector<1x4xf32>
      tpu.vector_store %arg7[%c0_34, %c0_35], %92 {strides = array<i32>} : memref<1x4xf32, #tpu.memory_space<vmem>>, vector<1x4xf32>,
    } else {
    }
    return
  }
  func.func @transform_0(%arg0: i32, %arg1: i32) -> (i32, i32) {
    %c0_i32 = arith.constant 0 : i32
    return %arg0, %arg1 : i32, i32
  }
  func.func @transform_1(%arg0: i32, %arg1: i32) -> (i32, i32) {
    %c0_i32 = arith.constant 0 : i32
    return %arg0, %arg1 : i32, i32
  }
  func.func @transform_2(%arg0: i32, %arg1: i32) -> (i32, i32) {
    %c0_i32 = arith.constant 0 : i32
    %c0_i32_0 = arith.constant 0 : i32
    %c0_i32_1 = arith.constant 0 : i32
    return %c0_i32, %c0_i32_0 : i32, i32
  }
  func.func @transform_3(%arg0: i32, %arg1: i32) -> (i32, i32) {
    %c0_i32 = arith.constant 0 : i32
    %c0_i32_0 = arith.constant 0 : i32
    %c0_i32_1 = arith.constant 0 : i32
    return %c0_i32, %c0_i32_0 : i32, i32
  }
  func.func @transform_4(%arg0: i32, %arg1: i32) -> (i32, i32) {
    %c0_i32 = arith.constant 0 : i32
    %c0_i32_0 = arith.constant 0 : i32
    %c0_i32_1 = arith.constant 0 : i32
    return %c0_i32, %c0_i32_0 : i32, i32
  }
  func.func @transform_5(%arg0: i32, %arg1: i32) -> (i32, i32) {
    %c0_i32 = arith.constant 0 : i32
    %c0_i32_0 = arith.constant 0 : i32
    %c0_i32_1 = arith.constant 0 : i32
    return %c0_i32, %c0_i32_0 : i32, i32
  }
}

</mosaic_0001>

<llo_original>
// kernel: _emd_loss_jit.1
$region0: #{_emd_loss_jit.1}
  #allocation0 [shape = 'u32[]', space=smem, size = 0x4, offset = 0x4, fixed_abs, tag = 'smem constant byte address 0x4 - core index']
  #allocation1 [shape = 'u32[144,128]{1,0:T(1,128)}', space=vmem, size = 0x12000, scoped, tag = 'internal scratch']
  #allocation2 [shape = 'f32[1,1]{1,0:T(1,128)}', space=vmem, size = 0x200, scoped, tag = 'scratch operand']
  %s0 = inlined_call_operand.vmem [shape: f32[16,128], index: 0, kind: input, shape index: {}]
  %s1 = inlined_call_operand.vmem [shape: f32[16,128], index: 1, kind: input, shape index: {}]
  %s2 = inlined_call_operand.vmem [shape: f32[16,16], index: 2, kind: input, shape index: {}]
  %s3 = inlined_call_operand.vmem [shape: f32[16,8], index: 3, kind: input, shape index: {}]
  %s4 = inlined_call_operand.vmem [shape: f32[1,2], index: 4, kind: input, shape index: {}]
  %s5 = inlined_call_operand.vmem [shape: f32[1,4], index: 5, kind: output, shape index: {}]
  %s6 = sld [smem:[#allocation0]]
  $region38: #{_emd_loss_jit.1} parent=0
    _
  %s8 = ssub.s32 1, %s6
  %s9 = scalar_select 0, %s8, %s6
  // Predicated region
  $region2: #{_emd_loss_jit.1} parent=0 // pred_check
    _
  $region3: #{_emd_loss_jit.1} parent=0 // pred_check_branch
    %11 = sbr.rel (0) target = $region5
  $region4: #{_emd_loss_jit.1} parent=0 // pred_region
    _
  $region5: #{_emd_loss_jit.1} parent=0 // pred_fallthru
    _
  // Predicated region
  $region6: #{_emd_loss_jit.1} parent=0 // pred_check
    _
  $region7: #{_emd_loss_jit.1} parent=0 // pred_check_branch
    %13 = sbr.rel (0) target = $region9
  $region8: #{_emd_loss_jit.1} parent=0 // pred_region
    _
  $region9: #{_emd_loss_jit.1} parent=0 // pred_fallthru
    _
  // Predicated region
  $region10: #{_emd_loss_jit.1} parent=0 // pred_check
    _
  $region11: #{_emd_loss_jit.1} parent=0 // pred_check_branch
    %15 = sbr.rel (0) target = $region13
  $region12: #{_emd_loss_jit.1} parent=0 // pred_region
    _
  $region13: #{_emd_loss_jit.1} parent=0 // pred_fallthru
    _
  // Predicated region
  $region14: #{_emd_loss_jit.1} parent=0 // pred_check
    _
  $region15: #{_emd_loss_jit.1} parent=0 // pred_check_branch
    %17 = sbr.rel (0) target = $region17
  $region16: #{_emd_loss_jit.1} parent=0 // pred_region
    _
  $region17: #{_emd_loss_jit.1} parent=0 // pred_fallthru
    _
  // Predicated region
  $region18: #{_emd_loss_jit.1} parent=0 // pred_check
    _
  $region19: #{_emd_loss_jit.1} parent=0 // pred_check_branch
    %19 = sbr.rel (0) target = $region21
  $region20: #{_emd_loss_jit.1} parent=0 // pred_region
    _
  $region21: #{_emd_loss_jit.1} parent=0 // pred_fallthru
    _
  %p20 = scmp.eq.s32.totalorder 0, 0
  %p21 = scmp.eq.s32.totalorder 0, 0
  %p22 = pnand %p20, %p21
  %p23 = pneg %p22
  // Predicated region
  $region22: #{_emd_loss_jit.1} parent=0 // pred_check
    _
  $region23: #{_emd_loss_jit.1} parent=0 // pred_check_branch
    %25 = sbr.rel (%p22) target = $region25
  $region24: #{_emd_loss_jit.1} parent=0 // pred_region
    %vm26 = vcmask 0
    %27 = vst.msk [vmem:[#allocation2] sm:$0x1] %vm26, 0.0
  $region25: #{_emd_loss_jit.1} parent=0 // pred_fallthru
    _
  %v28 = vld [vmem:[%s0] sm:$0xff]
  %v29 = vld [vmem:[%s0 + $0x8] sm:$0xff]
  %v30 = vld [vmem:[%s1] sm:$0xff]
  %v31 = vld [vmem:[%s1 + $0x8] sm:$0xff]
  %v32 = vsub.f32 %v28, %v30
  %v33 = vsub.f32 %v29, %v31
  %v34 = vld [vmem:[#allocation2] sm:$0x1]
  %v35 = vmul.f32 %v32, %v32
  %v36 = vmul.f32 %v33, %v33
  %v37 = vadd.f32 %v35, %v36
  %38 = vadd.xlane.f32.xlu0 %v37
  %v39 = vpop.xlane.xlu0 %38
  %v40 = vrot.slane %v39, 4
  %v41 = vadd.f32 %v39, %v40
  %v42 = vrot.slane %v41, 2
  %v43 = vadd.f32 %v41, %v42
  %v44 = vrot.slane %v43, 1
  %v45 = vadd.f32 %v43, %v44
  %s46 = vtos %v45
  %v47 = vstv %s46
  %v48 = vadd.f32 %v34, %v47
  %vm49 = vcmask 0
  %50 = vst.msk [vmem:[#allocation2] sm:$0x1] %vm49, %v48
  // Predicated region
  $region26: #{_emd_loss_jit.1} parent=0 // pred_check
    _
  $region27: #{_emd_loss_jit.1} parent=0 // pred_check_branch
    %52 = sbr.rel (%p22) target = $region29
  $region28: #{_emd_loss_jit.1} parent=0 // pred_region
    %v53 = vld [vmem:[#allocation2] sm:$0x1]
    %v54 = vrcp.pop 512.0
    %v55 = vmul.f32 %v53, %v54
    %v56 = vld [vmem:[%s3] sm:$0xff]
    %v57 = vld [vmem:[%s3 + $0x8] sm:$0xff]
    %v58 = vld [vmem:[%s2] sm:$0xff]
    %v59 = vld [vmem:[%s2 + $0x8] sm:$0xff]
    %vm60 = vcmask 130048
    %v62 = vsel %vm60, %v58, 0
    %v65 = vsel %vm60, %v59, 0
    %67 = vmatprep.subr.mxu0 0.0
    %68 = vmatpush1.msra.mxu0 0.0
    %69 = vmatprep.subr.mxu0 0.0
    %70 = vmatpush1.msra.mxu0 0.0
    %71 = vmatprep.subr.mxu0 0.0
    %72 = vmatpush1.msra.mxu0 0.0
    %73 = vmatprep.subr.mxu0 0.0
    %74 = vmatpush1.msra.mxu0 0.0
    %75 = vmatprep.subr.mxu0 0.0
    %76 = vmatpush1.msra.mxu0 0.0
    %77 = vmatprep.subr.mxu0 0.0
    %78 = vmatpush1.msra.mxu0 0.0
    %79 = vmatprep.subr.mxu0 0.0
    %80 = vmatpush1.msra.mxu0 0.0
    %81 = vmatprep.subr.mxu0 0.0
    %82 = vmatpush1.msra.mxu0 0.0
    %83 = vmatprep.subr.mxu0 0.0
    %84 = vmatpush1.msra.mxu0 0.0
    %85 = vmatprep.subr.mxu0 0.0
    %86 = vmatpush1.msra.mxu0 0.0
    %87 = vmatprep.subr.mxu0 0.0
    %88 = vmatpush1.msra.mxu0 0.0
    %89 = vmatprep.subr.mxu0 0.0
    %90 = vmatpush1.msra.mxu0 0.0
    %91 = vmatprep.subr.mxu0 0.0
    %92 = vmatpush1.msra.mxu0 0.0
    %93 = vmatprep.subr.mxu0 0.0
    %94 = vmatpush1.msra.mxu0 0.0
    %95 = vmatprep.subr.mxu0 0.0
    %96 = vmatpush1.msra.mxu0 %v57
    %97 = vmatprep.subr.mxu0 0.0
    %98 = vmatpush1.msra.mxu0 %v56
    %99 = vmatprep.subr.mxu0 0.0
    %100 = vmatpush2.msra.mxu0 0.0
    %101 = vmatprep.subr.mxu0 0.0
    %102 = vmatpush2.msra.mxu0 0.0
    %103 = vmatprep.subr.mxu0 0.0
    %104 = vmatpush2.msra.mxu0 0.0
    %105 = vmatprep.subr.mxu0 0.0
    %106 = vmatpush2.msra.mxu0 0.0
    %107 = vmatprep.subr.mxu0 0.0
    %108 = vmatpush2.msra.mxu0 0.0
    %109 = vmatprep.subr.mxu0 0.0
    %110 = vmatpush2.msra.mxu0 0.0
    %111 = vmatprep.subr.mxu0 0.0
    %112 = vmatpush2.msra.mxu0 0.0
    %113 = vmatprep.subr.mxu0 0.0
    %114 = vmatpush2.msra.mxu0 0.0
    %115 = vmatprep.subr.mxu0 0.0
    %116 = vmatpush2.msra.mxu0 0.0
    %117 = vmatprep.subr.mxu0 0.0
    %118 = vmatpush2.msra.mxu0 0.0
    %119 = vmatprep.subr.mxu0 0.0
    %120 = vmatpush2.msra.mxu0 0.0
    %121 = vmatprep.subr.mxu0 0.0
    %122 = vmatpush2.msra.mxu0 0.0
    %123 = vmatprep.subr.mxu0 0.0
    %124 = vmatpush2.msra.mxu0 0.0
    %125 = vmatprep.subr.mxu0 0.0
    %126 = vmatpush2.msra.mxu0 0.0
    %127 = vmatprep.subr.mxu0 0.0
    %128 = vmatpush2.msra.mxu0 0.0
    %129 = vmatprep.subr.mxu0 0.0
    %130 = vmatpush2.msra.mxu0 0.0
    %131 = vmatprep.mubr.f32.mxu0 0.0
    %132 = vmatmul.mubr.f32.gmra.mxu0 %v62
    %v133 = vpop.f32.mrf.mxu0
    %v134 = vadd.f32 0.0, %v133
    %v135 = vpop.f32.mrf.mxu0
    %136 = vmatprep.mubr.f32.mxu0 0.0
    %137 = vmatmul.mubr.f32.gmra.mxu0 %v65
    %v138 = vpop.f32.mrf.mxu0
    %v139 = vadd.f32 0.0, %v138
    %v140 = vpop.f32.mrf.mxu0
    %141 = vdwg.mxu0
    %v142 = vsub.f32 %v56, %v134
    %v143 = vsub.f32 %v57, %v139
    %v144 = vmul.f32 %v142, %v142
    %v145 = vmul.f32 %v143, %v143
    %vm146 = vcmask 23552
    %v147 = vsel %vm146, %v144, 0.0
    %v148 = vsel %vm146, %v145, 0.0
    %v149 = vadd.f32 %v147, %v148
    %150 = vadd.xlane.f32.xlu0 %v149
    %v151 = vpop.xlane.xlu0 %150
    %v152 = vrot.slane %v151, 4
    %v153 = vadd.f32 %v151, %v152
    %v154 = vrot.slane %v153, 2
    %v155 = vadd.f32 %v153, %v154
    %v156 = vrot.slane %v155, 1
    %v157 = vadd.f32 %v155, %v156
    %s158 = vtos %v157
    %v159 = vstv %s158
    %v160 = vrcp.pop 48.0
    %v161 = vmul.f32 %v159, %v160
    %164 = vrot.lane.b32.xlu0 %v56, 127
    %v165 = vpop.permute.xlu0 %164
    %166 = vrot.lane.b32.xlu0 %v57, 127
    %v167 = vpop.permute.xlu0 %166
    %v170 = vmax.f32 %v56, %v165
    %v171 = vmax.f32 %v57, %v167
    %v172 = vmul.f32 %v56, 0.8
    %v173 = vmul.f32 %v57, 0.8
    %176 = vrot.lane.b32.xlu0 %v172, 126
    %v177 = vpop.permute.xlu0 %176
    %178 = vrot.lane.b32.xlu0 %v173, 126
    %v179 = vpop.permute.xlu0 %178
    %v182 = vsub.f32 %v170, %v177
    %v183 = vsub.f32 %v171, %v179
    %v184 = vmax.f32 %v182, 0.0
    %v185 = vmax.f32 %v183, 0.0
    %vm186 = vcmask 7168
    %v187 = vsel %vm186, %v184, 0.0
    %v188 = vsel %vm186, %v185, 0.0
    %v189 = vadd.f32 %v187, %v188
    %190 = vadd.xlane.f32.xlu0 %v189
    %v191 = vpop.xlane.xlu0 %190
    %v192 = vrot.slane %v191, 4
    %v193 = vadd.f32 %v191, %v192
    %v194 = vrot.slane %v193, 2
    %v195 = vadd.f32 %v193, %v194
    %v196 = vrot.slane %v195, 1
    %v197 = vadd.f32 %v195, %v196
    %s198 = vtos %v197
    %v199 = vstv %s198
    %v200 = vrcp.pop 16.0
    %v201 = vmul.f32 %v199, %v200
    %v202 = vadd.f32 %v56, %v165
    %v203 = vadd.f32 %v57, %v167
    %v204 = vsub.f32 %v202, 15.0
    %v205 = vsub.f32 %v203, 15.0
    %v206 = vmax.f32 %v204, 0.0
    %v207 = vmax.f32 %v205, 0.0
    %210 = vrot.lane.b32.xlu0 %v206, 125
    %v211 = vpop.permute.xlu0 %210
    %212 = vrot.lane.b32.xlu0 %v207, 125
    %v213 = vpop.permute.xlu0 %212
    %v216 = vsel %vm186, %v211, 0.0
    %v217 = vsel %vm186, %v213, 0.0
    %v218 = vadd.f32 %v216, %v217
    %219 = vadd.xlane.f32.xlu0 %v218
    %v220 = vpop.xlane.xlu0 %219
    %v221 = vrot.slane %v220, 4
    %v222 = vadd.f32 %v220, %v221
    %v223 = vrot.slane %v222, 2
    %v224 = vadd.f32 %v222, %v223
    %v225 = vrot.slane %v224, 1
    %v226 = vadd.f32 %v224, %v225
    %s227 = vtos %v226
    %v228 = vstv %s227
    %v229 = vmul.f32 %v228, %v200
    %v230 = vadd.f32 %v201, %v229
    %v231 = vld [vmem:[%s4] sm:$0x1]
    %v232 = vmul.f32 %v231, %v161
    %v233 = vadd.f32 %v55, %v232
    %v234 = vmul.f32 %v231, %v230
    %236 = vrot.lane.b32.xlu0 %v234, 127
    %v237 = vpop.permute.xlu0 %236
    %v239 = vadd.f32 %v233, %v237
    %v240 = vlaneseq
    %v241 = vand.u32 %v240, 127
    %vm242 = vcmp.eq.s32.totalorder %v241, 0
    %vm243 = vcmp.eq.s32.totalorder %v241, 1
    %vm244 = vcmp.eq.s32.totalorder %v241, 2
    %v245 = vsel %vm244, %v161, %v230
    %247 = vset.pattern.permute.xlu0 0
    %248 = vperm.xlu0 %247, %v55
    %v249 = vpop.permute.xlu0 %248
    %v251 = vlaneseq
    %v252 = vshrl.u32 %v251, 7
    %v253 = vsub.s32 0, %v252
    %v254 = vrot.slane %v249, %v253
    %v255 = vsel %vm243, %v254, %v245
    %257 = vset.pattern.permute.xlu0 0
    %258 = vperm.xlu0 %257, %v239
    %v259 = vpop.permute.xlu0 %258
    %v261 = vlaneseq
    %v262 = vshrl.u32 %v261, 7
    %v263 = vsub.s32 0, %v262
    %v264 = vrot.slane %v259, %v263
    %v265 = vsel %vm242, %v264, %v255
    %vm266 = vcmask 24576
    %267 = vst.msk [vmem:[%s5] sm:$0x1] %vm266, %v265
  $region29: #{_emd_loss_jit.1} parent=0 // pred_fallthru
    _
  // Predicated region
  $region30: #{_emd_loss_jit.1} parent=0 // pred_check
    _
  $region31: #{_emd_loss_jit.1} parent=0 // pred_check_branch
    %269 = sbr.rel (0) target = $region33
  $region32: #{_emd_loss_jit.1} parent=0 // pred_region
    _
  $region33: #{_emd_loss_jit.1} parent=0 // pred_fallthru
    _
  // Predicated region
  $region34: #{_emd_loss_jit.1} parent=0 // pred_check
    _
  $region35: #{_emd_loss_jit.1} parent=0 // pred_check_branch
    %271 = sbr.rel (0) target = $region37
  $region36: #{_emd_loss_jit.1} parent=0 // pred_region
    _
  $region37: #{_emd_loss_jit.1} parent=0 // pred_fallthru
    _

</llo_original>
